<compile_context>
chip_gen: v5e
topology: v5e:2x2
jax: 0.10.0
libtpu: 0.0.40
codegen_flags: <defaults>
</compile_context>

<pallas_src>
import jax
import jax.numpy as jnp
from jax.experimental import pallas as pl
from jax.experimental.pallas import tpu as pltpu

TRUNC_NORM_INIT_STD = 1e-4  # config.trunc_norm_init_std


def _reduce_state_kernel(h_ref, c_ref, w_ref, b_ref, o_ref):
    # h_ref, c_ref : (2, B, H)  native LSTM state layout (no host transpose)
    # w_ref        : (2H, 2H)  = [W_h.T | W_c.T]
    # b_ref        : (1, 2H)   = [b_h   | b_c  ]
    # o_ref        : (2B, 2H)  fused output slab (rows :B -> h, rows B: -> c)
    x_h = jnp.concatenate([h_ref[0], h_ref[1]], axis=-1)   # (B, 2H) == h_in
    x_c = jnp.concatenate([c_ref[0], c_ref[1]], axis=-1)   # (B, 2H) == c_in
    x = jnp.concatenate([x_h, x_c], axis=0)                # (2B, 2H)

    # Single MXU matmul replaces the previous four K=H dots.
    y = jnp.dot(x, w_ref[...], preferred_element_type=jnp.float32)
    # Bias broadcast: top rows use cols [:H] (b_h), bottom rows use cols [H:]
    # (b_c); the two unused corner blocks are discarded outside the kernel.
    y = jnp.maximum(y + b_ref[...], 0.0)
    o_ref[...] = y.astype(o_ref.dtype)


def reduce_state_pallas(h, c, w_packed, b_packed):
    """Fused reduce of both LSTM states: relu(state_in @ W.T + b).

    h, c     : (2, B, H) float32   (native bidirectional-LSTM state layout)
    w_packed : (2H, 2H)  float32   [W_h.T | W_c.T]
    b_packed : (1, 2H)   float32   [b_h   | b_c  ]
    returns (out_h, out_c), each (1, B, H)
    """
    _, B, H = h.shape
    vmem_spec = pl.BlockSpec(memory_space=pltpu.MemorySpace.VMEM)

    slab = pl.pallas_call(
        _reduce_state_kernel,
        out_shape=jax.ShapeDtypeStruct((2 * B, 2 * H), h.dtype),
        in_specs=[vmem_spec, vmem_spec, vmem_spec, vmem_spec],
        out_specs=vmem_spec,
    )(h, c, w_packed, b_packed)

    # Layout plumbing only (cheap XLA slices/reshapes), not compute.
    out_h = slab[:B, :H].reshape(1, B, H)
    out_c = slab[B:, H:].reshape(1, B, H)
    return out_h, out_c


class ReduceStateParams:
    """Deterministic stand-in for the PyTorch module's parameters."""

    def __init__(self, key, hidden_dim):
        k1, k2, k3, k4 = jax.random.split(key, 4)
        std = TRUNC_NORM_INIT_STD
        # nn.Linear(2H, H): weight (H, 2H), bias (H,)
        self.w_h = jax.random.normal(k1, (hidden_dim, 2 * hidden_dim), jnp.float32) * std
        self.b_h = jax.random.normal(k2, (hidden_dim,), jnp.float32) * std
        self.w_c = jax.random.normal(k3, (hidden_dim, 2 * hidden_dim), jnp.float32) * std
        self.b_c = jax.random.normal(k4, (hidden_dim,), jnp.float32) * std

        # One-time repack for the kernel (no per-call glue ops):
        #   W_packed = [W_h.T | W_c.T]  (2H, 2H),   b_packed = [b_h | b_c]  (1, 2H)
        self.w_packed = jnp.concatenate([self.w_h.T, self.w_c.T], axis=-1)
        self.b_packed = jnp.concatenate([self.b_h, self.b_c]).reshape(1, 2 * hidden_dim)


def reduce_state_forward(params, hidden):
    h, c = hidden  # each (2, batch, hidden_dim)
    return reduce_state_pallas(h, c, params.w_packed, params.b_packed)


if __name__ == "__main__":
    hidden_dim = 32
    batch = 8

    key = jax.random.PRNGKey(0)
    kp, kh, kc = jax.random.split(key, 3)

    params = ReduceStateParams(kp, hidden_dim)
    h = jax.random.normal(kh, (2, batch, hidden_dim), jnp.float32)
    c = jax.random.normal(kc, (2, batch, hidden_dim), jnp.float32)

    out_h, out_c = reduce_state_forward(params, (h, c))
    jax.block_until_ready(out_h)
    jax.block_until_ready(out_c)

    # Reference check in plain JAX (mirrors the PyTorch transpose+view path).
    h_in = jnp.transpose(h, (1, 0, 2)).reshape(batch, 2 * hidden_dim)
    c_in = jnp.transpose(c, (1, 0, 2)).reshape(batch, 2 * hidden_dim)
    ref_h = jnp.maximum(h_in @ params.w_h.T + params.b_h, 0.0)[None]
    ref_c = jnp.maximum(c_in @ params.w_c.T + params.b_c, 0.0)[None]
    assert out_h.shape == (1, batch, hidden_dim)
    assert out_c.shape == (1, batch, hidden_dim)
    assert jnp.allclose(out_h, ref_h, atol=1e-5)
    assert jnp.allclose(out_c, ref_c, atol=1e-5)

    print("KERNEL_OK")
</pallas_src>

<mosaic_0001>
module attributes {stable_mosaic.version = 11 : i64} {
  func.func @_reduce_state_kernel(%arg0: memref<2x8x32xf32, #tpu.memory_space<vmem>>, %arg1: memref<2x8x32xf32, #tpu.memory_space<vmem>>, %arg2: memref<64x64xf32, #tpu.memory_space<vmem>>, %arg3: memref<1x64xf32, #tpu.memory_space<vmem>>, %arg4: memref<16x64xf32, #tpu.memory_space<vmem>>) attributes {dimension_semantics = [], scalar_prefetch = 0 : i64, scratch_operands = 0 : i64, tpu.core_type = #tpu.core_type<tc>} {
    %c0 = arith.constant 0 : index
    %c0_0 = arith.constant 0 : index
    %c0_1 = arith.constant 0 : index
    %0 = vector.load %arg0[%c0, %c0_0, %c0_1] : memref<2x8x32xf32, #tpu.memory_space<vmem>>, vector<1x8x32xf32>
    %1 = vector.shape_cast %0 : vector<1x8x32xf32> to vector<8x32xf32>
    %c1 = arith.constant 1 : index
    %c0_2 = arith.constant 0 : index
    %c0_3 = arith.constant 0 : index
    %2 = vector.load %arg0[%c1, %c0_2, %c0_3] : memref<2x8x32xf32, #tpu.memory_space<vmem>>, vector<1x8x32xf32>
    %3 = vector.shape_cast %2 : vector<1x8x32xf32> to vector<8x32xf32>
    %4 = tpu.concatenate %1, %3 in 1 : vector<8x32xf32>, vector<8x32xf32> -> vector<8x64xf32>
    %c0_4 = arith.constant 0 : index
    %c0_5 = arith.constant 0 : index
    %c0_6 = arith.constant 0 : index
    %5 = vector.load %arg1[%c0_4, %c0_5, %c0_6] : memref<2x8x32xf32, #tpu.memory_space<vmem>>, vector<1x8x32xf32>
    %6 = vector.shape_cast %5 : vector<1x8x32xf32> to vector<8x32xf32>
    %c1_7 = arith.constant 1 : index
    %c0_8 = arith.constant 0 : index
    %c0_9 = arith.constant 0 : index
    %7 = vector.load %arg1[%c1_7, %c0_8, %c0_9] : memref<2x8x32xf32, #tpu.memory_space<vmem>>, vector<1x8x32xf32>
    %8 = vector.shape_cast %7 : vector<1x8x32xf32> to vector<8x32xf32>
    %9 = tpu.concatenate %6, %8 in 1 : vector<8x32xf32>, vector<8x32xf32> -> vector<8x64xf32>
    %10 = tpu.concatenate %4, %9 in 0 : vector<8x64xf32>, vector<8x64xf32> -> vector<16x64xf32>
    %c0_10 = arith.constant 0 : index
    %c0_11 = arith.constant 0 : index
    %11 = vector.load %arg2[%c0_10, %c0_11] : memref<64x64xf32, #tpu.memory_space<vmem>>, vector<64x64xf32>
    %cst = arith.constant dense<0.000000e+00> : vector<16x64xf32>
    %12 = tpu.matmul %10, %11, %cst {dimension_numbers = #tpu.dot_dimension_numbers<[1], [0], [0], [1], [0, 0, 1, 1], [], []>} : vector<16x64xf32>, vector<64x64xf32>, vector<16x64xf32> -> vector<16x64xf32>
    %c0_12 = arith.constant 0 : index
    %c0_13 = arith.constant 0 : index
    %13 = vector.load %arg3[%c0_12, %c0_13] : memref<1x64xf32, #tpu.memory_space<vmem>>, vector<1x64xf32>
    %14 = vector.broadcast %13 : vector<1x64xf32> to vector<16x64xf32>
    %15 = arith.addf %12, %14 : vector<16x64xf32>
    %cst_14 = arith.constant 0.000000e+00 : f32
    %16 = vector.broadcast %cst_14 : f32 to vector<16x64xf32>
    %17 = arith.maximumf %15, %16 : vector<16x64xf32>
    %c0_15 = arith.constant 0 : index
    %c0_16 = arith.constant 0 : index
    %18 = vector.load %arg4[%c0_15, %c0_16] : memref<16x64xf32, #tpu.memory_space<vmem>>, vector<16x64xf32>
    tpu.vector_store %arg4[%c0_15, %c0_16], %17 {strides = array<i32>} : memref<16x64xf32, #tpu.memory_space<vmem>>, vector<16x64xf32>,
    return
  }
}

</mosaic_0001>

<llo_original>
// kernel: tpu_custom_call.1
$region0: #{tpu_custom_call.1}
  #allocation0 [shape = 'u32[]', space=smem, size = 0x4, offset = 0x4, fixed_abs, tag = 'smem constant byte address 0x4 - core index']
  #allocation1 [shape = 'u32[72,128]{1,0:T(1,128)}', space=vmem, size = 0x9000, scoped, tag = 'internal scratch']
  %s0 = inlined_call_operand.hbm [shape: f32[2,8,32], index: 0, kind: input, shape index: {}]
  %s1 = inlined_call_operand.hbm [shape: f32[2,8,32], index: 1, kind: input, shape index: {}]
  %s2 = inlined_call_operand.hbm [shape: f32[64,64], index: 2, kind: input, shape index: {}]
  %s3 = inlined_call_operand.vmem [shape: f32[1,64], index: 3, kind: input, shape index: {}]
  %s4 = inlined_call_operand.hbm [shape: f32[16,64], index: 4, kind: output, shape index: {}]
  %s5 = sld [smem:[#allocation0]]
  $region38: #{tpu_custom_call.1} parent=0
    _
  %s7 = ssub.s32 1, %s5
  %s8 = scalar_select 0, %s7, %s5
  $region1: #{tpu_custom_call.1} parent=0
    #allocation2 [shape = 'u8[8192]{0}', space=vmem, size = 0x2000, scoped, tag = 'input window, operand 0, single buffered']
    #allocation3 [shape = 's32[1]{0}', space=sflag, size = 0x4, scoped, tag = 'scoped memory for tpu_custom_call.1']
    #allocation4 [shape = 's32[1]{0}', space=sflag, size = 0x4, scoped, tag = 'scoped memory for tpu_custom_call.1']
    #allocation5 [shape = 'u8[8192]{0}', space=vmem, size = 0x2000, scoped, tag = 'input window, operand 1, single buffered']
    #allocation6 [shape = 's32[1]{0}', space=sflag, size = 0x4, scoped, tag = 'scoped memory for tpu_custom_call.1']
    #allocation7 [shape = 'u8[32768]{0}', space=vmem, size = 0x8000, scoped, tag = 'input window, operand 2, single buffered']
    #allocation8 [shape = 'u8[8192]{0}', space=vmem, size = 0x2000, scoped, tag = 'output window, operand 0, single buffered']
    %9 = vsyncpa [#allocation3], 0
    %10 = vsyncpa [#allocation6], 0
    %11 = vsyncpa [#allocation4], 0
    // Predicated region
    $region2: #{tpu_custom_call.1} parent=1 // pred_check
      _
    $region3: #{tpu_custom_call.1} parent=1 // pred_check_branch
      %13 = sbr.rel (0) target = $region5
    $region4: #{tpu_custom_call.1} parent=1 // pred_region
      %15 = vsyncadd [#allocation3], 0
      %s16 = sshll.u32 %s0, 4
      %s17 = int_to_ptr.hbm [resolvable:$true] %s16
      %s18 = sshll.u32 [#allocation2], 4
      %s19 = int_to_ptr.vmem [resolvable:$true] %s18
      %24 = dma.hbm_to_vmem [thread:$0]  %s17, 256, %s19, [#allocation3], 128, 128, 8
    $region5: #{tpu_custom_call.1} parent=1 // pred_fallthru
      _
    // Predicated region
    $region6: #{tpu_custom_call.1} parent=1 // pred_check
      _
    $region7: #{tpu_custom_call.1} parent=1 // pred_check_branch
      %26 = sbr.rel (0) target = $region9
    $region8: #{tpu_custom_call.1} parent=1 // pred_region
      %28 = vsyncadd [#allocation6], 0
      %s29 = sshll.u32 %s1, 4
      %s30 = int_to_ptr.hbm [resolvable:$true] %s29
      %s31 = sshll.u32 [#allocation5], 4
      %s32 = int_to_ptr.vmem [resolvable:$true] %s31
      %37 = dma.hbm_to_vmem [thread:$0]  %s30, 256, %s32, [#allocation6], 128, 128, 8
    $region9: #{tpu_custom_call.1} parent=1 // pred_fallthru
      _
    // Predicated region
    $region10: #{tpu_custom_call.1} parent=1 // pred_check
      _
    $region11: #{tpu_custom_call.1} parent=1 // pred_check_branch
      %39 = sbr.rel (0) target = $region13
    $region12: #{tpu_custom_call.1} parent=1 // pred_region
      %41 = vsyncadd [#allocation6], 0
      %s42 = sshll.u32 %s2, 4
      %s43 = int_to_ptr.hbm [resolvable:$true] %s42
      %s44 = sshll.u32 [#allocation7], 4
      %s45 = int_to_ptr.vmem [resolvable:$true] %s44
      %50 = dma.hbm_to_vmem [thread:$0]  %s43, 1024, %s45, [#allocation6], 128, 128, 8
    $region13: #{tpu_custom_call.1} parent=1 // pred_fallthru
      _
    // Predicated region
    $region14: #{tpu_custom_call.1} parent=1 // pred_check
      _
    $region15: #{tpu_custom_call.1} parent=1 // pred_check_branch
      %52 = sbr.rel (0) target = $region17
    $region16: #{tpu_custom_call.1} parent=1 // pred_region
      _
    $region17: #{tpu_custom_call.1} parent=1 // pred_fallthru
      _
    // Predicated region
    $region18: #{tpu_custom_call.1} parent=1 // pred_check
      _
    $region19: #{tpu_custom_call.1} parent=1 // pred_check_branch
      %54 = sbr.rel (0) target = $region21
    $region20: #{tpu_custom_call.1} parent=1 // pred_region
      %56 = dma.done [#allocation3], 256
    $region21: #{tpu_custom_call.1} parent=1 // pred_fallthru
      _
    // Predicated region
    $region22: #{tpu_custom_call.1} parent=1 // pred_check
      _
    $region23: #{tpu_custom_call.1} parent=1 // pred_check_branch
      %58 = sbr.rel (0) target = $region25
    $region24: #{tpu_custom_call.1} parent=1 // pred_region
      %60 = dma.done [#allocation6], 256
    $region25: #{tpu_custom_call.1} parent=1 // pred_fallthru
      _
    // Predicated region
    $region26: #{tpu_custom_call.1} parent=1 // pred_check
      _
    $region27: #{tpu_custom_call.1} parent=1 // pred_check_branch
      %62 = sbr.rel (0) target = $region29
    $region28: #{tpu_custom_call.1} parent=1 // pred_region
      %64 = dma.done [#allocation6], 1024
    $region29: #{tpu_custom_call.1} parent=1 // pred_fallthru
      _
    %v65 = vld [vmem:[#allocation2] sm:$0xff]
    %s66 = scalar_lea.vmem [#allocation2], 8
    %v67 = vld [vmem:[%s66] sm:$0xff]
    %69 = vrot.lane.b32.xlu0 %v67, 32
    %v70 = vpop.permute.xlu0 %69
    %vm72 = vcmask 261120
    %v73 = vsel %vm72, %v65, %v70
    %v74 = vld [vmem:[#allocation5] sm:$0xff]
    %s75 = scalar_lea.vmem [#allocation5], 8
    %v76 = vld [vmem:[%s75] sm:$0xff]
    %78 = vrot.lane.b32.xlu0 %v76, 32
    %v79 = vpop.permute.xlu0 %78
    %v81 = vsel %vm72, %v74, %v79
    %v82 = vld [vmem:[#allocation7] sm:$0xff]
    %v83 = vld [vmem:[#allocation7 + $0x8] sm:$0xff]
    %v84 = vld [vmem:[#allocation7 + $0x10] sm:$0xff]
    %v85 = vld [vmem:[#allocation7 + $0x18] sm:$0xff]
    %v86 = vld [vmem:[#allocation7 + $0x20] sm:$0xff]
    %v87 = vld [vmem:[#allocation7 + $0x28] sm:$0xff]
    %v88 = vld [vmem:[#allocation7 + $0x30] sm:$0xff]
    %v89 = vld [vmem:[#allocation7 + $0x38] sm:$0xff]
    %v90 = vld [vmem:[%s3] sm:$0x1]
    %v92 = vperm.slane %v90, 0
    %vm94 = vcmask 523264
    %v96 = vsel %vm94, %v73, 0
    %v99 = vsel %vm94, %v81, 0
    %101 = vmatpush.msra.mxu0 0.0
    %102 = vmatpush.msra.mxu0 0.0
    %103 = vmatpush.msra.mxu0 0.0
    %104 = vmatpush.msra.mxu0 0.0
    %105 = vmatpush.msra.mxu0 0.0
    %106 = vmatpush.msra.mxu0 0.0
    %107 = vmatpush.msra.mxu0 0.0
    %108 = vmatpush.msra.mxu0 0.0
    %109 = vmatpush.msra.mxu0 %v89
    %110 = vmatpush.msra.mxu0 %v88
    %111 = vmatpush.msra.mxu0 %v87
    %112 = vmatpush.msra.mxu0 %v86
    %113 = vmatpush.msra.mxu0 %v85
    %114 = vmatpush.msra.mxu0 %v84
    %115 = vmatpush.msra.mxu0 %v83
    %116 = vmatpush.msra.mxu0 %v82
    %117 = vmatmul.f32.gmra.mxu0 %v96
    %v118 = vpop.f32.mrf.mxu0
    %v119 = vadd.f32 %v92, %v118
    %120 = vmatmul.f32.gmra.mxu0 %v99
    %v121 = vpop.f32.mrf.mxu0
    %v122 = vadd.f32 %v92, %v121
    %123 = vdwg.mxu0
    %v124 = vmax.f32 %v119, 0.0
    %v125 = vmax.f32 %v122, 0.0
    %126 = vst.msk [vmem:[#allocation8] sm:$0xff] %vm94, %v124
    %127 = vst.msk [vmem:[#allocation8 + $0x8] sm:$0xff] %vm94, %v125
    // Predicated region
    $region30: #{tpu_custom_call.1} parent=1 // pred_check
      _
    $region31: #{tpu_custom_call.1} parent=1 // pred_check_branch
      %129 = sbr.rel (0) target = $region33
    $region32: #{tpu_custom_call.1} parent=1 // pred_region
      %131 = vsyncadd [#allocation4], 0
      %s132 = sshll.u32 [#allocation8], 4
      %s133 = int_to_ptr.vmem [resolvable:$true] %s132
      %s134 = sshll.u32 %s4, 4
      %s135 = int_to_ptr.hbm [resolvable:$true] %s134
      %140 = dma.vmem_to_hbm [thread:$0]  %s133, 256, %s135, [#allocation4], 128, 128, 8
    $region33: #{tpu_custom_call.1} parent=1 // pred_fallthru
      _
    // Predicated region
    $region34: #{tpu_custom_call.1} parent=1 // pred_check
      _
    $region35: #{tpu_custom_call.1} parent=1 // pred_check_branch
      %142 = sbr.rel (0) target = $region37
    $region36: #{tpu_custom_call.1} parent=1 // pred_region
      %144 = dma.done [#allocation4], 256
    $region37: #{tpu_custom_call.1} parent=1 // pred_fallthru
      _
    %145 = vsyncpa [#allocation3], 1
    %146 = vsyncpa [#allocation6], 1
    %147 = vsyncpa [#allocation4], 1

</llo_original>
